<compile_context>
chip_gen: v5e
topology: v5e:2x2
jax: 0.10.0
libtpu: 0.0.40
codegen_flags: <defaults>
</compile_context>

<pallas_src>
import functools

import jax
import jax.numpy as jnp
from jax.experimental import pallas as pl
from jax.experimental.pallas import tpu as pltpu


def _mlp_kernel(x_ref, w_ref, p_ref, out_ref, acc_ref, *, eps, negative_slope):
    k = pl.program_id(1)  # reduction axis over input_dim (innermost)

    @pl.when(k == 0)
    def _():
        acc_ref[...] = jnp.zeros_like(acc_ref)

    # bf16 x bf16 -> f32 accumulate: native MXU path, no in-kernel upcast copy.
    # x block: (B, block_k) bf16; w block: (block_k, block_n) bf16, lane-dense N.
    acc_ref[...] += jnp.dot(x_ref[...], w_ref[...],
                            preferred_element_type=jnp.float32)

    @pl.when(k == pl.num_programs(1) - 1)
    def _():
        params = p_ref[...]                        # (3, block_n) f32
        bias = params[0:1, :]
        gamma = params[1:2, :]
        beta = params[2:3, :]
        z = acc_ref[...] + bias                    # bias, broadcast over batch
        # BatchNorm1d, training-mode statistics (biased variance) over the FULL
        # batch (B is resident in this block; only features are tiled).
        mean = jnp.mean(z, axis=0, keepdims=True)
        var = jnp.mean((z - mean) ** 2, axis=0, keepdims=True)
        zn = (z - mean) * jax.lax.rsqrt(var + eps) * gamma + beta
        # LeakyReLU(negative_slope=0.2)
        y = jnp.where(zn >= 0, zn, negative_slope * zn)
        # TODO(synk): Dropout(p=0.1) is applied as identity (inference mode), and
        # BatchNorm running-stat updates (training-only side effect) are not emitted.
        out_ref[...] = y.astype(out_ref.dtype)


def mlp_forward(x, weight, bias, gamma=None, beta=None, *,
                eps=1e-5, negative_slope=0.2,
                block_k=None, block_n=None, stream_dtype=jnp.bfloat16):
    """x: (B, input_dim); weight: (out_dim, input_dim) (PyTorch nn.Linear layout);
    bias/gamma/beta: (out_dim,). Returns {"attention": (B, out_dim)} in x.dtype."""
    B, K = x.shape
    N, K_w = weight.shape
    assert K == K_w, "weight must be (out_dim, input_dim)"
    out_dtype = x.dtype

    if gamma is None:
        gamma = jnp.ones((N,), jnp.float32)
    if beta is None:
        beta = jnp.zeros((N,), jnp.float32)

    # ---- generation-aware VMEM budget ------------------------------------
    try:
        info = pltpu.get_tpu_info()
        vmem_cap = int(getattr(info, "vmem_capacity_bytes", 64 * 1024 * 1024))
    except Exception:
        vmem_cap = 64 * 1024 * 1024            # conservative (v7x per-TC) fallback
    vmem_budget = int(vmem_cap * 0.75)         # ~25% headroom

    s_bytes = jnp.dtype(stream_dtype).itemsize
    o_bytes = jnp.dtype(out_dtype).itemsize

    # ---- N tiling ---------------------------------------------------------
    # Small out_dim: keep full feature dim resident; else 256-wide tiles
    # (MXU width on v6e/v7x, even block count for v7x megacore sharding).
    if block_n is None:
        block_n = N if N <= 512 else 256
    if N % block_n != 0 or (block_n != N and block_n % 128 != 0):
        block_n = N
    nb = N // block_n

    # ---- K tiling ---------------------------------------------------------
    if block_k is None:
        block_k = K if K <= 2048 else 2048
    if K % block_k != 0 or (block_k != K and block_k % 128 != 0):
        block_k = K

    def _need(bk):
        return (2 * B * bk * s_bytes            # x, double-buffered
                + 2 * bk * block_n * s_bytes    # w, double-buffered
                + 2 * B * block_n * o_bytes     # out, double-buffered
                + B * block_n * 4               # f32 accumulator scratch
                + 2 * 3 * block_n * 4)          # fused bias/gamma/beta

    # Shrink block_k only if the double buffers would not fit the budget.
    while (_need(block_k) > vmem_budget and block_k > 128
           and (block_k // 2) % 128 == 0 and K % (block_k // 2) == 0):
        block_k //= 2
    kb = K // block_k

    need = _need(block_k)
    vmem_limit = int(min(max(2 * need, 16 * 1024 * 1024), vmem_budget))
    vmem_limit = max(vmem_limit, need)          # never clamp below actual need

    # One-time layout/dtype transforms OUTSIDE the kernel:
    #   weight (N, K) f32 -> (K, N) bf16 (contraction on sublane axis, lane-dense N)
    #   x f32 -> bf16 (halves the re-streamed operand), params fused to (3, N) f32.
    w_kn = weight.T.astype(stream_dtype)
    x_s = x.astype(stream_dtype)
    params = jnp.stack([jnp.asarray(bias, jnp.float32),
                        jnp.asarray(gamma, jnp.float32),
                        jnp.asarray(beta, jnp.float32)], axis=0)

    cost = pl.CostEstimate(
        flops=2 * B * N * K,
        transcendentals=0,
        bytes_accessed=(nb * B * K * s_bytes    # x re-streamed per N block
                        + K * N * s_bytes       # weight streamed once
                        + B * N * o_bytes       # output
                        + 3 * N * 4))           # fused params

    kernel = functools.partial(_mlp_kernel, eps=eps, negative_slope=negative_slope)

    out = pl.pallas_call(
        kernel,
        out_shape=jax.ShapeDtypeStruct((B, N), out_dtype),
        grid_spec=pltpu.PrefetchScalarGridSpec(
            num_scalar_prefetch=0,
            grid=(nb, kb),                      # (parallel N, reduction K last)
            in_specs=[
                # x: full batch resident, streamed along K, bf16.
                pl.BlockSpec((B, block_k), lambda j, k: (0, k)),
                # weight slab, (K, N) bf16, lane-dense out_dim.
                pl.BlockSpec((block_k, block_n), lambda j, k: (k, j)),
                # fused bias/gamma/beta, tiled on N only.
                pl.BlockSpec((3, block_n), lambda j, k: (0, j)),
            ],
            out_specs=pl.BlockSpec((B, block_n), lambda j, k: (0, j)),
            scratch_shapes=[pltpu.VMEM((B, block_n), jnp.float32)],
        ),
        compiler_params=pltpu.CompilerParams(
            dimension_semantics=("parallel", "arbitrary"),
            vmem_limit_bytes=vmem_limit),
        cost_estimate=cost,
    )(x_s, w_kn, params)

    return {"attention": out}


def _reference(x, weight, bias, gamma, beta, eps=1e-5, negative_slope=0.2):
    z = jnp.dot(x, weight.T, precision=jax.lax.Precision.HIGHEST) + bias
    mean = jnp.mean(z, axis=0, keepdims=True)
    var = jnp.mean((z - mean) ** 2, axis=0, keepdims=True)
    zn = (z - mean) / jnp.sqrt(var + eps)
    zn = zn * gamma + beta
    return jnp.where(zn >= 0, zn, negative_slope * zn)


if __name__ == "__main__":
    # Small shapes consistent with the module (defaults input_dim=4096, out_dim=256,
    # scaled down); an explicit small block_k exercises the K reduction axis.
    B, input_dim, out_dim = 8, 512, 256

    key = jax.random.PRNGKey(0)
    k_x, k_w, k_b = jax.random.split(key, 3)

    x = jax.random.normal(k_x, (B, input_dim), jnp.float32)
    # nn.Linear default init: U(-1/sqrt(fan_in), 1/sqrt(fan_in)).
    bound = 1.0 / float(jnp.sqrt(jnp.float32(input_dim)))
    weight = jax.random.uniform(k_w, (out_dim, input_dim), jnp.float32, -bound, bound)
    bias = jax.random.uniform(k_b, (out_dim,), jnp.float32, -bound, bound)
    gamma = jnp.ones((out_dim,), jnp.float32)   # BatchNorm1d affine defaults
    beta = jnp.zeros((out_dim,), jnp.float32)

    # Run 1: tiled reduction axis (grid = (1, 4)).
    out = mlp_forward(x, weight, bias, gamma, beta, block_k=128)
    att = jax.block_until_ready(out["attention"])
    assert att.shape == (B, out_dim)

    # Run 2: default tiling (full-extent blocks, grid = (1, 1)).
    att2 = jax.block_until_ready(
        mlp_forward(x, weight, bias, gamma, beta)["attention"])

    # Tight check: reference computed with the SAME bf16-streamed x/W the kernel
    # sees (isolates kernel math from the streaming-dtype choice).
    x_q = x.astype(jnp.bfloat16).astype(jnp.float32)
    w_q = weight.astype(jnp.bfloat16).astype(jnp.float32)
    ref_q = _reference(x_q, w_q, bias, gamma, beta)
    assert jnp.allclose(att, ref_q, rtol=1e-2, atol=1e-2), "mismatch vs bf16-stream reference"
    assert jnp.allclose(att2, ref_q, rtol=1e-2, atol=1e-2), "mismatch vs bf16-stream reference (default tiles)"

    # Loose check: full-f32 reference (drift comes only from bf16 streaming).
    ref_f32 = _reference(x, weight, bias, gamma, beta)
    assert jnp.allclose(att, ref_f32, rtol=5e-2, atol=5e-2), "mismatch vs f32 reference"

    print("KERNEL_OK")
</pallas_src>

<mosaic_0001>
module attributes {stable_mosaic.version = 11 : i64} {
  func.func @_mlp_kernel(%arg0: i32, %arg1: i32, %arg2: memref<8x128xbf16, #tpu.memory_space<vmem>>, %arg3: memref<128x256xbf16, #tpu.memory_space<vmem>>, %arg4: memref<3x256xf32, #tpu.memory_space<vmem>>, %arg5: memref<8x256xf32, #tpu.memory_space<vmem>>, %arg6: memref<8x256xf32, #tpu.memory_space<vmem>>) attributes {dimension_semantics = [#tpu.dimension_semantics<parallel>, #tpu.dimension_semantics<arbitrary>], iteration_bounds = array<i64: 1, 4>, scalar_prefetch = 0 : i64, scratch_operands = 1 : i64, tpu.core_type = #tpu.core_type<tc>, window_params = [{transform_indices = @transform_0, window_bounds = array<i64: 8, 128>}, {transform_indices = @transform_1, window_bounds = array<i64: 128, 256>}, {transform_indices = @transform_2, window_bounds = array<i64: 3, 256>}, {transform_indices = @transform_3, window_bounds = array<i64: 8, 256>}]} {
    %c0_i32 = arith.constant 0 : i32
    %0 = arith.cmpi eq, %arg1, %c0_i32 : i32
    %1 = arith.extui %0 : i1 to i32
    %c0_i32_0 = arith.constant 0 : i32
    %2 = arith.cmpi ne, %1, %c0_i32_0 : i32
    scf.if %2 {
      %cst_9 = arith.constant 0.000000e+00 : f32
      %12 = vector.broadcast %cst_9 : f32 to vector<8x256xf32>
      %c0_10 = arith.constant 0 : index
      %c0_11 = arith.constant 0 : index
      %13 = vector.load %arg6[%c0_10, %c0_11] : memref<8x256xf32, #tpu.memory_space<vmem>>, vector<8x256xf32>
      tpu.vector_store %arg6[%c0_10, %c0_11], %12 {strides = array<i32>} : memref<8x256xf32, #tpu.memory_space<vmem>>, vector<8x256xf32>,
    } else {
    }
    %c0 = arith.constant 0 : index
    %c0_1 = arith.constant 0 : index
    %3 = vector.load %arg6[%c0, %c0_1] : memref<8x256xf32, #tpu.memory_space<vmem>>, vector<8x256xf32>
    %c0_2 = arith.constant 0 : index
    %c0_3 = arith.constant 0 : index
    %4 = vector.load %arg2[%c0_2, %c0_3] : memref<8x128xbf16, #tpu.memory_space<vmem>>, vector<8x128xbf16>
    %c0_4 = arith.constant 0 : index
    %c0_5 = arith.constant 0 : index
    %5 = vector.load %arg3[%c0_4, %c0_5] : memref<128x256xbf16, #tpu.memory_space<vmem>>, vector<128x256xbf16>
    %cst = arith.constant dense<0.000000e+00> : vector<8x256xf32>
    %6 = tpu.matmul %4, %5, %cst {dimension_numbers = #tpu.dot_dimension_numbers<[1], [0], [0], [1], [0, 0, 1, 1], [], []>} : vector<8x128xbf16>, vector<128x256xbf16>, vector<8x256xf32> -> vector<8x256xf32>
    %7 = arith.addf %3, %6 : vector<8x256xf32>
    %c0_6 = arith.constant 0 : index
    %c0_7 = arith.constant 0 : index
    %8 = vector.load %arg6[%c0_6, %c0_7] : memref<8x256xf32, #tpu.memory_space<vmem>>, vector<8x256xf32>
    tpu.vector_store %arg6[%c0_6, %c0_7], %7 {strides = array<i32>} : memref<8x256xf32, #tpu.memory_space<vmem>>, vector<8x256xf32>,
    %c3_i32 = arith.constant 3 : i32
    %9 = arith.cmpi eq, %arg1, %c3_i32 : i32
    %10 = arith.extui %9 : i1 to i32
    %c0_i32_8 = arith.constant 0 : i32
    %11 = arith.cmpi ne, %10, %c0_i32_8 : i32
    scf.if %11 {
      %c0_9 = arith.constant 0 : index
      %c0_10 = arith.constant 0 : index
      %12 = vector.load %arg4[%c0_9, %c0_10] : memref<3x256xf32, #tpu.memory_space<vmem>>, vector<3x256xf32>
      %13 = vector.extract_strided_slice %12 {offsets = [0, 0], sizes = [1, 256], strides = [1, 1]} : vector<3x256xf32> to vector<1x256xf32>
      %14 = vector.extract_strided_slice %12 {offsets = [1, 0], sizes = [1, 256], strides = [1, 1]} : vector<3x256xf32> to vector<1x256xf32>
      %15 = vector.extract_strided_slice %12 {offsets = [2, 0], sizes = [1, 256], strides = [1, 1]} : vector<3x256xf32> to vector<1x256xf32>
      %c0_11 = arith.constant 0 : index
      %c0_12 = arith.constant 0 : index
      %16 = vector.load %arg6[%c0_11, %c0_12] : memref<8x256xf32, #tpu.memory_space<vmem>>, vector<8x256xf32>
      %17 = vector.broadcast %13 : vector<1x256xf32> to vector<8x256xf32>
      %18 = arith.addf %16, %17 : vector<8x256xf32>
      %cst_13 = arith.constant dense<0.000000e+00> : vector<256xf32>
      %19 = vector.multi_reduction <add>, %18, %cst_13 [0] : vector<8x256xf32> to vector<256xf32>
      %20 = vector.shape_cast %19 : vector<256xf32> to vector<1x256xf32>
      %cst_14 = arith.constant 8.000000e+00 : f32
      %21 = vector.broadcast %cst_14 : f32 to vector<1x256xf32>
      %22 = arith.divf %20, %21 : vector<1x256xf32>
      %23 = vector.broadcast %22 : vector<1x256xf32> to vector<8x256xf32>
      %24 = arith.subf %18, %23 : vector<8x256xf32>
      %25 = arith.mulf %24, %24 : vector<8x256xf32>
      %cst_15 = arith.constant dense<0.000000e+00> : vector<256xf32>
      %26 = vector.multi_reduction <add>, %25, %cst_15 [0] : vector<8x256xf32> to vector<256xf32>
      %27 = vector.shape_cast %26 : vector<256xf32> to vector<1x256xf32>
      %cst_16 = arith.constant 8.000000e+00 : f32
      %28 = vector.broadcast %cst_16 : f32 to vector<1x256xf32>
      %29 = arith.divf %27, %28 : vector<1x256xf32>
      %30 = vector.broadcast %22 : vector<1x256xf32> to vector<8x256xf32>
      %31 = arith.subf %18, %30 : vector<8x256xf32>
      %cst_17 = arith.constant 9.99999974E-6 : f32
      %32 = vector.broadcast %cst_17 : f32 to vector<1x256xf32>
      %33 = arith.addf %29, %32 : vector<1x256xf32>
      %34 = math.rsqrt %33 : vector<1x256xf32>
      %35 = vector.broadcast %34 : vector<1x256xf32> to vector<8x256xf32>
      %36 = arith.mulf %31, %35 : vector<8x256xf32>
      %37 = vector.broadcast %14 : vector<1x256xf32> to vector<8x256xf32>
      %38 = arith.mulf %36, %37 : vector<8x256xf32>
      %39 = vector.broadcast %15 : vector<1x256xf32> to vector<8x256xf32>
      %40 = arith.addf %38, %39 : vector<8x256xf32>
      %cst_18 = arith.constant 0.000000e+00 : f32
      %41 = vector.broadcast %cst_18 : f32 to vector<8x256xf32>
      %42 = arith.cmpf oge, %40, %41 : vector<8x256xf32>
      %cst_19 = arith.constant 2.000000e-01 : f32
      %43 = vector.broadcast %cst_19 : f32 to vector<8x256xf32>
      %44 = arith.mulf %43, %40 : vector<8x256xf32>
      %45 = arith.select %42, %40, %44 : vector<8x256xi1>, vector<8x256xf32>
      %c0_20 = arith.constant 0 : index
      %c0_21 = arith.constant 0 : index
      %46 = vector.load %arg5[%c0_20, %c0_21] : memref<8x256xf32, #tpu.memory_space<vmem>>, vector<8x256xf32>
      tpu.vector_store %arg5[%c0_20, %c0_21], %45 {strides = array<i32>} : memref<8x256xf32, #tpu.memory_space<vmem>>, vector<8x256xf32>,
    } else {
    }
    return
  }
  func.func @transform_0(%arg0: i32, %arg1: i32) -> (i32, i32) {
    %c0_i32 = arith.constant 0 : i32
    %c0_i32_0 = arith.constant 0 : i32
    return %c0_i32, %arg1 : i32, i32
  }
  func.func @transform_1(%arg0: i32, %arg1: i32) -> (i32, i32) {
    %c0_i32 = arith.constant 0 : i32
    return %arg1, %arg0 : i32, i32
  }
  func.func @transform_2(%arg0: i32, %arg1: i32) -> (i32, i32) {
    %c0_i32 = arith.constant 0 : i32
    %c0_i32_0 = arith.constant 0 : i32
    return %c0_i32, %arg0 : i32, i32
  }
  func.func @transform_3(%arg0: i32, %arg1: i32) -> (i32, i32) {
    %c0_i32 = arith.constant 0 : i32
    %c0_i32_0 = arith.constant 0 : i32
    return %c0_i32, %arg0 : i32, i32
  }
}

</mosaic_0001>

<llo_original>
// kernel: tpu_custom_call.1
$region0: #{tpu_custom_call.1}
  #allocation0 [shape = 'u32[]', space=smem, size = 0x4, offset = 0x4, fixed_abs, tag = 'smem constant byte address 0x4 - core index']
  #allocation1 [shape = 'u32[72,128]{1,0:T(1,128)}', space=vmem, size = 0x9000, scoped, tag = 'internal scratch']
  #allocation2 [shape = 'f32[8,256]{1,0:T(8,128)}', space=vmem, size = 0x2000, scoped, tag = 'scratch operand']
  %s0 = inlined_call_operand.hbm [shape: bf16[8,512], index: 0, kind: input, shape index: {}]
  %s1 = inlined_call_operand.hbm [shape: bf16[512,256], index: 1, kind: input, shape index: {}]
  %s2 = inlined_call_operand.hbm [shape: f32[3,256], index: 2, kind: input, shape index: {}]
  %s3 = inlined_call_operand.hbm [shape: f32[8,256], index: 3, kind: output, shape index: {}]
  %s4 = sld [smem:[#allocation0]]
  $region65: #{tpu_custom_call.1} parent=0
    _
  %s6 = ssub.s32 1, %s4
  %s7 = scalar_select 0, %s6, %s4
  $region1: #{tpu_custom_call.1} parent=0
    #allocation3 [shape = 'u8[4096]{0}', space=vmem, size = 0x1000, scoped, tag = 'input window, operand 0']
    #allocation4 [shape = 's32[2]{0}', space=sflag, size = 0x8, scoped, tag = 'scoped memory for tpu_custom_call.1']
    #allocation5 [shape = 's32[2]{0}', space=sflag, size = 0x8, scoped, tag = 'scoped memory for tpu_custom_call.1']
    #allocation6 [shape = 'u8[131072]{0}', space=vmem, size = 0x20000, scoped, tag = 'input window, operand 1']
    #allocation7 [shape = 's32[2]{0}', space=sflag, size = 0x8, scoped, tag = 'scoped memory for tpu_custom_call.1']
    #allocation8 [shape = 'u8[4096]{0}', space=vmem, size = 0x1000, scoped, tag = 'input window, operand 2, single buffered']
    #allocation9 [shape = 'u8[8192]{0}', space=vmem, size = 0x2000, scoped, tag = 'output window, operand 0, single buffered']
    %8 = vsyncpa [#allocation4], 0
    %s9 = scalar_lea.sflag [#allocation4], 1
    %10 = vsyncpa %s9, 0
    %11 = vsyncpa [#allocation7], 0
    %s12 = scalar_lea.sflag [#allocation7], 1
    %13 = vsyncpa %s12, 0
    %14 = vsyncpa [#allocation5], 0
    loop: start=0, step=1, limit=6
    $region2: #{tpu_custom_call.1} parent=1 // loop_pre_header
      _
    $region3: #{tpu_custom_call.1} parent=1 // loop_header
      %s16 = sphi 0, %s20
      %p17 = scmp.ge.s32.totalorder %s16, 6
      %s23 = sphi 0, %s35
      %s24 = sphi 0, %s31
      %s25 = sphi 0, %s23
      %s26 = sphi 0, %s24
      %s27 = sphi 0, %s25
      %s28 = sphi 0, %s26
      %s38 = sphi 0, %s40
      %s41 = sphi 0, %s38
      %s42 = sphi 0, %s41
      %s58 = sphi 0, %s42
      %s66 = sphi 0, %s68
      %s69 = sphi 0, %s66
      %s70 = sphi 0, %s69
      %s86 = sphi 0, %s70
      %s92 = sphi 0, %s94
      %s95 = sphi 0, %s92
      %s96 = sphi 0, %s95
      %s112 = sphi 0, %s96
      %s118 = sphi 0, %s120
      %s121 = sphi 0, %s118
      %s122 = sphi 0, %s121
      %s138 = sphi 0, %s122
    $region4: #{tpu_custom_call.1} parent=1 // loop_header_branch
      %19 = sbr.rel (%p17) target = $region8
    $region5: #{tpu_custom_call.1} parent=1 // loop_body
      %s21 = ssub.s32 %s16, 1
      %s22 = ssub.s32 %s16, 2
      %s29 = sadd.s32 1, %s24
      %p30 = scmp.ge.s32.totalorder %s29, 4
      %s31 = scalar_select %p30, 0, %s29
      %s32 = sadd.s32 1, %s23
      %s33 = scalar_select %p30, %s32, %s23
      %p34 = scmp.ge.s32.totalorder %s33, 1
      %s35 = scalar_select %p34, 0, %s33
      %s36 = ssub.s32 %s24, %s31
      %p37 = scmp.eq.s32.totalorder %s36, 0
      %s39 = sadd.s32 %s38, 1
      %s40 = scalar_select %p37, %s38, %s39
      %p43 = pneg %p37
      %p44 = scmp.eq.s32.totalorder %s16, 3
      %p45 = por %p43, %p44
      %p46 = scmp.ne.s32.totalorder %s38, %s41
      %p47 = scmp.eq.s32.totalorder %s16, 0
      %p48 = por %p46, %p47
      %p49 = scmp.ne.s32.totalorder %s38, %s41
      %p50 = scmp.eq.s32.totalorder %s21, 3
      %p51 = por %p49, %p50
      %p52 = scmp.ne.s32.totalorder %s41, %s42
      %p53 = scmp.eq.s32.totalorder %s21, 0
      %p54 = por %p52, %p53
      %p55 = scmp.ne.s32.totalorder %s41, %s42
      %p56 = scmp.eq.s32.totalorder %s22, 3
      %p57 = por %p55, %p56
      %p59 = scmp.ne.s32.totalorder %s42, %s58
      %p60 = scmp.eq.s32.totalorder %s22, 0
      %p61 = por %p59, %p60
      %s62 = ssub.s32 %s24, %s31
      %s63 = ssub.s32 %s23, %s35
      %s64 = sor.u32 %s62, %s63
      %p65 = scmp.eq.s32.totalorder %s64, 0
      %s67 = sadd.s32 %s66, 1
      %s68 = scalar_select %p65, %s66, %s67
      %p71 = pneg %p65
      %p72 = scmp.eq.s32.totalorder %s16, 3
      %p73 = por %p71, %p72
      %p74 = scmp.ne.s32.totalorder %s66, %s69
      %p75 = scmp.eq.s32.totalorder %s16, 0
      %p76 = por %p74, %p75
      %p77 = scmp.ne.s32.totalorder %s66, %s69
      %p78 = scmp.eq.s32.totalorder %s21, 3
      %p79 = por %p77, %p78
      %p80 = scmp.ne.s32.totalorder %s69, %s70
      %p81 = scmp.eq.s32.totalorder %s21, 0
      %p82 = por %p80, %p81
      %p83 = scmp.ne.s32.totalorder %s69, %s70
      %p84 = scmp.eq.s32.totalorder %s22, 3
      %p85 = por %p83, %p84
      %p87 = scmp.ne.s32.totalorder %s70, %s86
      %p88 = scmp.eq.s32.totalorder %s22, 0
      %p89 = por %p87, %p88
      %s90 = ssub.s32 %s23, %s35
      %p91 = scmp.eq.s32.totalorder %s90, 0
      %s93 = sadd.s32 %s92, 1
      %s94 = scalar_select %p91, %s92, %s93
      %p97 = pneg %p91
      %p98 = scmp.eq.s32.totalorder %s16, 3
      %p99 = por %p97, %p98
      %p100 = scmp.ne.s32.totalorder %s92, %s95
      %p101 = scmp.eq.s32.totalorder %s16, 0
      %p102 = por %p100, %p101
      %p103 = scmp.ne.s32.totalorder %s92, %s95
      %p104 = scmp.eq.s32.totalorder %s21, 3
      %p105 = por %p103, %p104
      %p106 = scmp.ne.s32.totalorder %s95, %s96
      %p107 = scmp.eq.s32.totalorder %s21, 0
      %p108 = por %p106, %p107
      %p109 = scmp.ne.s32.totalorder %s95, %s96
      %p110 = scmp.eq.s32.totalorder %s22, 3
      %p111 = por %p109, %p110
      %p113 = scmp.ne.s32.totalorder %s96, %s112
      %p114 = scmp.eq.s32.totalorder %s22, 0
      %p115 = por %p113, %p114
      %s116 = ssub.s32 %s23, %s35
      %p117 = scmp.eq.s32.totalorder %s116, 0
      %s119 = sadd.s32 %s118, 1
      %s120 = scalar_select %p117, %s118, %s119
      %p123 = pneg %p117
      %p124 = scmp.eq.s32.totalorder %s16, 3
      %p125 = por %p123, %p124
      %p126 = scmp.ne.s32.totalorder %s118, %s121
      %p127 = scmp.eq.s32.totalorder %s16, 0
      %p128 = por %p126, %p127
      %p129 = scmp.ne.s32.totalorder %s118, %s121
      %p130 = scmp.eq.s32.totalorder %s21, 3
      %p131 = por %p129, %p130
      %p132 = scmp.ne.s32.totalorder %s121, %s122
      %p133 = scmp.eq.s32.totalorder %s21, 0
      %p134 = por %p132, %p133
      %p135 = scmp.ne.s32.totalorder %s121, %s122
      %p136 = scmp.eq.s32.totalorder %s22, 3
      %p137 = por %p135, %p136
      %p139 = scmp.ne.s32.totalorder %s122, %s138
      %p140 = scmp.eq.s32.totalorder %s22, 0
      %p141 = por %p139, %p140
      %p142 = scmp.le.s32.totalorder 1, %s16
      %p143 = scmp.lt.s32.totalorder %s16, 5
      %p144 = pnand %p142, %p143
      %p145 = pneg %p144
      // Predicated region
      $region9: #{tpu_custom_call.1} parent=5 // pred_check
        _
      $region10: #{tpu_custom_call.1} parent=5 // pred_check_branch
        %147 = sbr.rel (%p144) target = $region12
      $region11: #{tpu_custom_call.1} parent=5 // pred_region
        %s148 = ssub.s32 %s16, 1
        // Predicated region
        $region13: #{tpu_custom_call.1} parent=11 // pred_check
          %p149 = pneg %p108
        $region14: #{tpu_custom_call.1} parent=11 // pred_check_branch
          %151 = sbr.rel (%p149) target = $region16
        $region15: #{tpu_custom_call.1} parent=11 // pred_region
          %s152 = smul.u32 2, %s25
          %154 = vsyncadd [#allocation7], 0
          %s155 = smul.addr %s152, 4
          %s156 = scalar_lea.hbm %s2, %s155
          %s158 = sshll.u32 %s156, 4
          %s159 = int_to_ptr.hbm [resolvable:$true] %s158
          %s160 = sshll.u32 [#allocation8], 4
          %s161 = int_to_ptr.vmem [resolvable:$true] %s160
          %163 = dma.hbm_to_vmem [thread:$0]  %s159, 128, %s161, [#allocation7]
        $region16: #{tpu_custom_call.1} parent=11 // pred_fallthru
          _
      $region12: #{tpu_custom_call.1} parent=5 // pred_fallthru
        _
      %p164 = scmp.lt.s32.totalorder %s16, 4
      // Predicated region
      $region17: #{tpu_custom_call.1} parent=5 // pred_check
        %p165 = pneg %p164
      $region18: #{tpu_custom_call.1} parent=5 // pred_check_branch
        %167 = sbr.rel (%p165) target = $region20
      $region19: #{tpu_custom_call.1} parent=5 // pred_region
        // Predicated region
        $region21: #{tpu_custom_call.1} parent=19 // pred_check
          %p168 = pneg %p48
        $region22: #{tpu_custom_call.1} parent=19 // pred_check_branch
          %170 = sbr.rel (%p168) target = $region24
        $region23: #{tpu_custom_call.1} parent=19 // pred_region
          %s171 = sand.u32 %s38, 1
          %s172 = scalar_lea.sflag [#allocation4], %s171
          %s173 = sand.u32 %s38, 1
          %s174 = smul.addr %s173, 4
          %s175 = scalar_lea.vmem [#allocation3], %s174
          %177 = vsyncadd %s172, 0
          %s178 = smul.addr %s24, 4
          %s179 = scalar_lea.hbm %s0, %s178
          %s181 = sshll.u32 %s179, 4
          %s182 = int_to_ptr.hbm [resolvable:$true] %s181
          %s183 = sshll.u32 %s175, 4
          %s184 = int_to_ptr.vmem [resolvable:$true] %s183
          %186 = dma.hbm_to_vmem [thread:$0]  %s182, 64, %s184, %s172
        $region24: #{tpu_custom_call.1} parent=19 // pred_fallthru
          _
        // Predicated region
        $region25: #{tpu_custom_call.1} parent=19 // pred_check
          %p187 = pneg %p76
        $region26: #{tpu_custom_call.1} parent=19 // pred_check_branch
          %189 = sbr.rel (%p187) target = $region28
        $region27: #{tpu_custom_call.1} parent=19 // pred_region
          %s190 = sand.u32 %s16, 1
          %s191 = scalar_lea.sflag [#allocation7], %s190
          %s192 = sand.u32 %s66, 1
          %s193 = smul.addr %s192, 128
          %s194 = scalar_lea.vmem [#allocation6], %s193
          %s195 = smul.u32 16, %s24
          %s196 = smul.u32 2, %s23
          %198 = vsyncadd %s191, 0
          %s199 = smul.addr %s195, 2
          %s200 = sadd.s32 %s196, %s199
          %s201 = smul.addr %s200, 4
          %s202 = scalar_lea.hbm %s1, %s201
          %s203 = sshll.u32 %s202, 4
          %s204 = int_to_ptr.hbm [resolvable:$true] %s203
          %s205 = sshll.u32 %s194, 4
          %s206 = int_to_ptr.vmem [resolvable:$true] %s205
          %211 = dma.hbm_to_vmem [thread:$0]  %s204, 2048, %s206, %s191, 128, 128, 8
        $region28: #{tpu_custom_call.1} parent=19 // pred_fallthru
          _
      $region20: #{tpu_custom_call.1} parent=5 // pred_fallthru
        _
      %p212 = scmp.le.s32.totalorder 1, %s16
      %p213 = scmp.lt.s32.totalorder %s16, 5
      %p214 = pnand %p212, %p213
      %p215 = pneg %p214
      // Predicated region
      $region29: #{tpu_custom_call.1} parent=5 // pred_check
        _
      $region30: #{tpu_custom_call.1} parent=5 // pred_check_branch
        %217 = sbr.rel (%p214) target = $region32
      $region31: #{tpu_custom_call.1} parent=5 // pred_region
        %s218 = ssub.s32 %s16, 1
        %s219 = sand.u32 %s41, 1
        %s220 = scalar_lea.sflag [#allocation4], %s219
        %s221 = sand.u32 %s41, 1
        %s222 = smul.addr %s221, 4
        %s223 = scalar_lea.vmem [#allocation3], %s222
        // Predicated region
        $region33: #{tpu_custom_call.1} parent=31 // pred_check
          %p224 = pneg %p54
        $region34: #{tpu_custom_call.1} parent=31 // pred_check_branch
          %226 = sbr.rel (%p224) target = $region36
        $region35: #{tpu_custom_call.1} parent=31 // pred_region
          %228 = dma.done %s220, 64
        $region36: #{tpu_custom_call.1} parent=31 // pred_fallthru
          _
        %s229 = sand.u32 %s21, 1
        %s230 = scalar_lea.sflag [#allocation7], %s229
        %s231 = sand.u32 %s69, 1
        %s232 = smul.addr %s231, 128
        %s233 = scalar_lea.vmem [#allocation6], %s232
        // Predicated region
        $region37: #{tpu_custom_call.1} parent=31 // pred_check
          %p234 = pneg %p82
        $region38: #{tpu_custom_call.1} parent=31 // pred_check_branch
          %236 = sbr.rel (%p234) target = $region40
        $region39: #{tpu_custom_call.1} parent=31 // pred_region
          %238 = dma.done %s230, 2048
        $region40: #{tpu_custom_call.1} parent=31 // pred_fallthru
          _
        // Predicated region
        $region41: #{tpu_custom_call.1} parent=31 // pred_check
          %p239 = pneg %p108
        $region42: #{tpu_custom_call.1} parent=31 // pred_check_branch
          %241 = sbr.rel (%p239) target = $region44
        $region43: #{tpu_custom_call.1} parent=31 // pred_region
          %243 = dma.done [#allocation7], 128
        $region44: #{tpu_custom_call.1} parent=31 // pred_fallthru
          _
        %s244 = sand.u32 %s41, 1
        %s245 = scalar_lea.sflag [#allocation4], %s244
        %s246 = sand.u32 %s41, 1
        %s247 = smul.addr %s246, 4
        %s248 = scalar_lea.vmem [#allocation3], %s247
        %p249 = pneg %p54
        %p250 = pneg %p51
        %s251 = sand.u32 %s21, 1
        %s252 = scalar_lea.sflag [#allocation7], %s251
        %s253 = sand.u32 %s69, 1
        %s254 = smul.addr %s253, 128
        %s255 = scalar_lea.vmem [#allocation6], %s254
        %p256 = pneg %p82
        %p257 = pneg %p79
        %p258 = pneg %p108
        %p259 = pneg %p105
        %p260 = pneg %p134
        %p261 = pneg %p131
        %s262 = smul.u32 16, %s26
        %s263 = smul.u32 2, %s25
        %s264 = smul.u32 2, %s25
        %s265 = smul.u32 2, %s25
        %p266 = scmp.eq.s32.totalorder %s26, 0
        // Predicated region
        $region45: #{tpu_custom_call.1} parent=31 // pred_check
          %p267 = pneg %p266
        $region46: #{tpu_custom_call.1} parent=31 // pred_check_branch
          %269 = sbr.rel (%p267) target = $region48
        $region47: #{tpu_custom_call.1} parent=31 // pred_region
          %270 = vst [vmem:[#allocation2] sm:$0xff] 0.0
          %271 = vst [vmem:[#allocation2 + $0x8] sm:$0xff] 0.0
        $region48: #{tpu_custom_call.1} parent=31 // pred_fallthru
          _
        %v272 = vld [vmem:[#allocation2] sm:$0xff]
        %v273 = vld [vmem:[#allocation2 + $0x8] sm:$0xff]
        %v274 = vld [vmem:[%s223] sm:$0xf]
        %v275 = vld [vmem:[%s233] sm:$0xff]
        %v276 = vld [vmem:[%s233 + $0x8] sm:$0xff]
        %v277 = vld [vmem:[%s233 + $0x10] sm:$0xff]
        %v278 = vld [vmem:[%s233 + $0x18] sm:$0xff]
        %v279 = vld [vmem:[%s233 + $0x20] sm:$0xff]
        %v280 = vld [vmem:[%s233 + $0x28] sm:$0xff]
        %v281 = vld [vmem:[%s233 + $0x30] sm:$0xff]
        %v282 = vld [vmem:[%s233 + $0x38] sm:$0xff]
        %v283 = vld [vmem:[%s233 + $0x40] sm:$0xff]
        %v284 = vld [vmem:[%s233 + $0x48] sm:$0xff]
        %v285 = vld [vmem:[%s233 + $0x50] sm:$0xff]
        %v286 = vld [vmem:[%s233 + $0x58] sm:$0xff]
        %v287 = vld [vmem:[%s233 + $0x60] sm:$0xff]
        %v288 = vld [vmem:[%s233 + $0x68] sm:$0xff]
        %v289 = vld [vmem:[%s233 + $0x70] sm:$0xff]
        %v290 = vld [vmem:[%s233 + $0x78] sm:$0xff]
        %v307 = vunpack.c.l.b16 %v275
        %v308 = vunpack.c.h.b16 %v275
        %v309 = vunpack.c.l.b16 %v276
        %v310 = vunpack.c.h.b16 %v276
        %v311 = vunpack.c.l.b16 %v277
        %v312 = vunpack.c.h.b16 %v277
        %v313 = vunpack.c.l.b16 %v278
        %v314 = vunpack.c.h.b16 %v278
        %v315 = vunpack.c.l.b16 %v279
        %v316 = vunpack.c.h.b16 %v279
        %v317 = vunpack.c.l.b16 %v280
        %v318 = vunpack.c.h.b16 %v280
        %v319 = vunpack.c.l.b16 %v281
        %v320 = vunpack.c.h.b16 %v281
        %v321 = vunpack.c.l.b16 %v282
        %v322 = vunpack.c.h.b16 %v282
        %v323 = vunpack.c.l.b16 %v283
        %v324 = vunpack.c.h.b16 %v283
        %v325 = vunpack.c.l.b16 %v284
        %v326 = vunpack.c.h.b16 %v284
        %v327 = vunpack.c.l.b16 %v285
        %v328 = vunpack.c.h.b16 %v285
        %v329 = vunpack.c.l.b16 %v286
        %v330 = vunpack.c.h.b16 %v286
        %v331 = vunpack.c.l.b16 %v287
        %v332 = vunpack.c.h.b16 %v287
        %v333 = vunpack.c.l.b16 %v288
        %v334 = vunpack.c.h.b16 %v288
        %v335 = vunpack.c.l.b16 %v289
        %v336 = vunpack.c.h.b16 %v289
        %v337 = vunpack.c.l.b16 %v290
        %v338 = vunpack.c.h.b16 %v290
        %v339 = vpack.c.b16 %v309, %v307
        %v340 = vpack.c.b16 %v310, %v308
        %v341 = vpack.c.b16 %v313, %v311
        %v342 = vpack.c.b16 %v314, %v312
        %v343 = vpack.c.b16 %v317, %v315
        %v344 = vpack.c.b16 %v318, %v316
        %v345 = vpack.c.b16 %v321, %v319
        %v346 = vpack.c.b16 %v322, %v320
        %v347 = vpack.c.b16 %v325, %v323
        %v348 = vpack.c.b16 %v326, %v324
        %v349 = vpack.c.b16 %v329, %v327
        %v350 = vpack.c.b16 %v330, %v328
        %v351 = vpack.c.b16 %v333, %v331
        %v352 = vpack.c.b16 %v334, %v332
        %v353 = vpack.c.b16 %v337, %v335
        %v354 = vpack.c.b16 %v338, %v336
        %371 = vmatpush.bf16.msra.mxu0 %v353
        %372 = vmatpush.bf16.msra.mxu0 %v351
        %373 = vmatpush.bf16.msra.mxu0 %v349
        %374 = vmatpush.bf16.msra.mxu0 %v347
        %375 = vmatpush.bf16.msra.mxu0 %v345
        %376 = vmatpush.bf16.msra.mxu0 %v343
        %377 = vmatpush.bf16.msra.mxu0 %v341
        %378 = vmatpush.bf16.msra.mxu0 %v339
        %379 = vmatmul.bf16.gmra.mxu0 %v274
        %v380 = vpop.f32.mrf.mxu0
        %v381 = vadd.f32 0.0, %v380
        %v382 = vpop.f32.mrf.mxu0
        %383 = vdwg.mxu0
        %384 = vmatpush.bf16.msra.mxu0 %v354
        %385 = vmatpush.bf16.msra.mxu0 %v352
        %386 = vmatpush.bf16.msra.mxu0 %v350
        %387 = vmatpush.bf16.msra.mxu0 %v348
        %388 = vmatpush.bf16.msra.mxu0 %v346
        %389 = vmatpush.bf16.msra.mxu0 %v344
        %390 = vmatpush.bf16.msra.mxu0 %v342
        %391 = vmatpush.bf16.msra.mxu0 %v340
        %392 = vmatmul.bf16.gmra.mxu0 %v274
        %v393 = vpop.f32.mrf.mxu0
        %v394 = vadd.f32 0.0, %v393
        %v395 = vpop.f32.mrf.mxu0
        %396 = vdwg.mxu0
        %v397 = vadd.f32 %v272, %v381
        %v398 = vadd.f32 %v273, %v394
        %399 = vst [vmem:[#allocation2] sm:$0xff] %v397
        %400 = vst [vmem:[#allocation2 + $0x8] sm:$0xff] %v398
        %p401 = scmp.eq.s32.totalorder %s26, 3
        // Predicated region
        $region49: #{tpu_custom_call.1} parent=31 // pred_check
          %p402 = pneg %p401
        $region50: #{tpu_custom_call.1} parent=31 // pred_check_branch
          %404 = sbr.rel (%p402) target = $region52
        $region51: #{tpu_custom_call.1} parent=31 // pred_region
          %v405 = vld [vmem:[#allocation8] sm:$0x77]
          %v406 = vld [vmem:[#allocation2] sm:$0xff]
          %v407 = vld [vmem:[#allocation2 + $0x8] sm:$0xff]
          %v409 = vperm.slane %v405, 0
          %v410 = vperm.slane %v405, 4
          %v413 = vperm.slane %v409, 0
          %v414 = vperm.slane %v410, 0
          %v415 = vadd.f32 %v406, %v413
          %v416 = vadd.f32 %v407, %v414
          %v417 = vrot.slane %v415, 4
          %v418 = vadd.f32 %v415, %v417
          %v419 = vrot.slane %v418, 2
          %v420 = vadd.f32 %v418, %v419
          %v421 = vrot.slane %v420, 1
          %v422 = vadd.f32 %v420, %v421
          %v423 = vrot.slane %v416, 4
          %v424 = vadd.f32 %v416, %v423
          %v425 = vrot.slane %v424, 2
          %v426 = vadd.f32 %v424, %v425
          %v427 = vrot.slane %v426, 1
          %v428 = vadd.f32 %v426, %v427
          %v429 = vrcp.pop 8.0
          %v430 = vmul.f32 8.0, %v429
          %v431 = vsub.f32 1.0, %v430
          %v432 = vmul.f32 %v429, %v431
          %v433 = vadd.f32 %v429, %v432
          %vm434 = vweird.f32 %v429
          %v435 = vsel %vm434, %v429, %v433
          %v436 = vmul.f32 %v422, %v435
          %v437 = vmul.f32 %v428, %v435
          %v438 = vsub.f32 %v415, %v436
          %v439 = vsub.f32 %v416, %v437
          %v440 = vmul.f32 %v438, %v438
          %v441 = vmul.f32 %v439, %v439
          %v442 = vrot.slane %v440, 4
          %v443 = vadd.f32 %v440, %v442
          %v444 = vrot.slane %v443, 2
          %v445 = vadd.f32 %v443, %v444
          %v446 = vrot.slane %v445, 1
          %v447 = vadd.f32 %v445, %v446
          %v448 = vrot.slane %v441, 4
          %v449 = vadd.f32 %v441, %v448
          %v450 = vrot.slane %v449, 2
          %v451 = vadd.f32 %v449, %v450
          %v452 = vrot.slane %v451, 1
          %v453 = vadd.f32 %v451, %v452
          %v454 = vmul.f32 %v447, %v435
          %v455 = vmul.f32 %v453, %v435
          %v456 = vadd.f32 %v454, 1e-05
          %v457 = vadd.f32 %v455, 1e-05
          %v458 = vrsqrt.pop %v456
          %v459 = vmul.f32 %v458, %v456
          %v460 = vmul.f32 %v459, %v458
          %v461 = vmul.f32 0.5, %v460
          %v462 = vsub.f32 1.5, %v461
          %v463 = vmul.f32 %v458, %v462
          %vm464 = vweird.f32 %v456
          %vm465 = vweird.f32 %v458
          %vm466 = vmor %vm464, %vm465
          %v467 = vsel %vm466, %v458, %v463
          %v468 = vrsqrt.pop %v457
          %v469 = vmul.f32 %v468, %v457
          %v470 = vmul.f32 %v469, %v468
          %v471 = vmul.f32 0.5, %v470
          %v472 = vsub.f32 1.5, %v471
          %v473 = vmul.f32 %v468, %v472
          %vm474 = vweird.f32 %v457
          %vm475 = vweird.f32 %v468
          %vm476 = vmor %vm474, %vm475
          %v477 = vsel %vm476, %v468, %v473
          %v478 = vmul.f32 %v438, %v467
          %v479 = vmul.f32 %v439, %v477
          %v480 = vperm.slane %v405, 1
          %v481 = vperm.slane %v405, 5
          %v484 = vperm.slane %v480, 1
          %v485 = vperm.slane %v481, 1
          %v486 = vmul.f32 %v478, %v484
          %v487 = vmul.f32 %v479, %v485
          %v488 = vperm.slane %v405, 2
          %v489 = vperm.slane %v405, 6
          %v492 = vperm.slane %v488, 2
          %v493 = vperm.slane %v489, 2
          %v494 = vadd.f32 %v486, %v492
          %v495 = vadd.f32 %v487, %v493
          %vm496 = vcmp.ge.f32.partialorder %v494, 0.0
          %vm497 = vcmp.ge.f32.partialorder %v495, 0.0
          %v498 = vmul.f32 %v494, 0.2
          %v499 = vmul.f32 %v495, 0.2
          %v500 = vsel %vm496, %v494, %v498
          %v501 = vsel %vm497, %v495, %v499
          %502 = vst [vmem:[#allocation9] sm:$0xff] %v500
          %503 = vst [vmem:[#allocation9 + $0x8] sm:$0xff] %v501
        $region52: #{tpu_custom_call.1} parent=31 // pred_fallthru
          _
        // Predicated region
        $region53: #{tpu_custom_call.1} parent=31 // pred_check
          %p504 = pneg %p131
        $region54: #{tpu_custom_call.1} parent=31 // pred_check_branch
          %506 = sbr.rel (%p504) target = $region56
        $region55: #{tpu_custom_call.1} parent=31 // pred_region
          %s507 = smul.u32 2, %s25
          %509 = vsyncadd [#allocation5], 0
          %s510 = smul.addr %s507, 8
          %s511 = scalar_lea.hbm %s3, %s510
          %s513 = sshll.u32 [#allocation9], 4
          %s514 = int_to_ptr.vmem [resolvable:$true] %s513
          %s515 = sshll.u32 %s511, 4
          %s516 = int_to_ptr.hbm [resolvable:$true] %s515
          %518 = dma.vmem_to_hbm [thread:$0]  %s514, 256, %s516, [#allocation5]
        $region56: #{tpu_custom_call.1} parent=31 // pred_fallthru
          _
        // Predicated region
        $region57: #{tpu_custom_call.1} parent=31 // pred_check
          %p519 = pneg %p131
        $region58: #{tpu_custom_call.1} parent=31 // pred_check_branch
          %521 = sbr.rel (%p519) target = $region60
        $region59: #{tpu_custom_call.1} parent=31 // pred_region
          %523 = dma.done [#allocation5], 256
        $region60: #{tpu_custom_call.1} parent=31 // pred_fallthru
          _
      $region32: #{tpu_custom_call.1} parent=5 // pred_fallthru
        _
      %p524 = scmp.le.s32.totalorder 2, %s16
      // Predicated region
      $region61: #{tpu_custom_call.1} parent=5 // pred_check
        %p525 = pneg %p524
      $region62: #{tpu_custom_call.1} parent=5 // pred_check_branch
        %527 = sbr.rel (%p525) target = $region64
      $region63: #{tpu_custom_call.1} parent=5 // pred_region
        %s528 = ssub.s32 %s16, 2
      $region64: #{tpu_custom_call.1} parent=5 // pred_fallthru
        _
    $region6: #{tpu_custom_call.1} parent=1 // loop_footer
      %s20 = sadd.s32 1, %s16
    $region7: #{tpu_custom_call.1} parent=1 // loop_footer_branch
      %15 = sbr.rel target = $region3
    $region8: #{tpu_custom_call.1} parent=1 // loop_exit
      _
    %529 = vsyncpa [#allocation4], 1
    %s530 = scalar_lea.sflag [#allocation4], 1
    %531 = vsyncpa %s530, 1
    %532 = vsyncpa [#allocation7], 1
    %s533 = scalar_lea.sflag [#allocation7], 1
    %534 = vsyncpa %s533, 1
    %535 = vsyncpa [#allocation5], 1
    %s536 = scalar_lea.sflag [#allocation5], 1
    %537 = vsyncpa %s536, 1

</llo_original>
